<compile_context>
chip_gen: v7x
topology: tpu7x:2x2x1
jax: 0.10.0
libtpu: 0.0.40
codegen_flags: <defaults>
</compile_context>

<pallas_src>
import functools

import jax
import jax.numpy as jnp
from jax.experimental import pallas as pl
from jax.experimental.pallas import tpu as pltpu


def _make_shift_kernel(orig_len, pad_value):
    """Kernel over one (TILE_R, L_pad) block: dynamic lane roll + pad mask."""

    def kernel(scal_ref, x_ref, o_ref):
        x = x_ref[...]                                    # (TILE_R, L_pad)
        shift = scal_ref[0]                               # signed shift (SMEM)
        roll_amt = scal_ref[1]                            # shift mod L_pad >= 0
        rolled = pltpu.roll(x, roll_amt, axis=1)          # XLU lane rotate
        lane = jax.lax.broadcasted_iota(jnp.int32, x.shape, 1)
        # Valid output lanes are [shift, shift + orig_len); everything else is
        # padding (covers both positive and negative shifts; lanes >= orig_len
        # are stripped by the wrapper anyway).
        valid = (lane >= shift) & (lane < shift + orig_len)
        pad = jnp.asarray(pad_value, dtype=x.dtype)
        o_ref[...] = jnp.where(valid, rolled, pad)        # VPU select

    return kernel


def _choose_tile_rows(num_rows, l_pad, itemsize, target_block_bytes=2 * 1024 * 1024):
    """Pick a sublane-dense row tile targeting a few-MiB block."""
    row_bytes = l_pad * itemsize
    rows = max(1, target_block_bytes // row_bytes)
    rows = max(8, (rows // 8) * 8)                        # multiple of 8 sublanes
    rows_cap = ((num_rows + 7) // 8) * 8                  # full padded extent
    return int(min(rows, rows_cap))


@functools.partial(jax.jit, static_argnames=("pad_value",))
def _shift_sequence_pallas(seq, shift, pad_value=0):
    """seq: (B, C, L); shift: int32 scalar (traced). Returns shifted seq."""
    B, C, L = seq.shape
    dtype = seq.dtype
    itemsize = jnp.dtype(dtype).itemsize

    R = B * C
    l_pad = ((L + 127) // 128) * 128                      # lane-dense last dim
    tile_r = _choose_tile_rows(R, l_pad, itemsize)
    r_pad = ((R + tile_r - 1) // tile_r) * tile_r

    x2 = seq.reshape(R, L)
    if (r_pad, l_pad) != (R, L):
        x2 = jnp.pad(x2, ((0, r_pad - R), (0, l_pad - L)))

    shift_i = shift.astype(jnp.int32)
    roll_amt = jnp.mod(shift_i, l_pad).astype(jnp.int32)  # non-negative amount
    scalars = jnp.stack([shift_i, roll_amt])              # (2,) int32 -> SMEM

    block_bytes = tile_r * l_pad * itemsize
    # 2 double-buffered input blocks + 2 output blocks, plus slack.
    vmem_limit = min(128 * 1024 * 1024,
                     max(32 * 1024 * 1024, 4 * block_bytes + (4 << 20)))
    # TODO(synk): for extremely long L where 4*block exceeds v7x's 64 MiB VMEM,
    # additionally tile L (needs a <=shift_max lane halo per L-tile).

    out = pl.pallas_call(
        _make_shift_kernel(L, pad_value),
        out_shape=jax.ShapeDtypeStruct((r_pad, l_pad), dtype),
        grid_spec=pltpu.PrefetchScalarGridSpec(
            num_scalar_prefetch=1,
            grid=(r_pad // tile_r,),
            in_specs=[pl.BlockSpec((tile_r, l_pad), lambda i, s: (i, 0))],
            out_specs=pl.BlockSpec((tile_r, l_pad), lambda i, s: (i, 0)),
        ),
        compiler_params=pltpu.CompilerParams(
            dimension_semantics=("parallel",),
            vmem_limit_bytes=vmem_limit,
        ),
    )(scalars, x2)

    return out[:R, :L].reshape(B, C, L)


def _shift_sequence_xla(seq, shift, pad_value):
    """Pure-XLA path for tiny tensors (Pallas launch overhead dominates)."""
    _, _, L = seq.shape
    shift = shift.astype(jnp.int32)
    lane = jnp.arange(L, dtype=jnp.int32)
    valid = (lane >= shift) & (lane < shift + L)
    rolled = jnp.roll(seq, shift, axis=2)
    return jnp.where(valid[None, None, :], rolled, jnp.asarray(pad_value, seq.dtype))


class StochasticShift:
    """JAX/Pallas port of orthrus.layers.StochasticShift (no learned params)."""

    def __init__(self, shift_max=3, symmetric=False, pad_value=0,
                 min_pallas_elements=1 << 15):
        self.shift_max = shift_max
        self.symmetric = symmetric
        self.pad_value = pad_value                         # keep original type
        self.min_pallas_elements = min_pallas_elements
        if symmetric:
            self.augment_shifts = tuple(range(-shift_max, shift_max + 1))
        else:
            self.augment_shifts = tuple(range(0, shift_max + 1))

    def __call__(self, seq_1hot, key, training=True):
        if seq_1hot.ndim != 3:
            raise ValueError("input sequence should be rank 3")
        if not training:
            return seq_1hot
        shifts = jnp.asarray(self.augment_shifts, dtype=jnp.int32)
        shift_i = jax.random.randint(key, (), 0, len(self.augment_shifts))
        shift = shifts[shift_i]
        if seq_1hot.size < self.min_pallas_elements:
            return _shift_sequence_xla(seq_1hot, shift, self.pad_value)
        return _shift_sequence_pallas(seq_1hot, shift, pad_value=self.pad_value)


def _reference_shift(seq, shift, pad_value):
    """Pure-JAX reference mirroring the PyTorch shift_sequence()."""
    B, C, _ = seq.shape
    if shift == 0:
        return seq
    pad = jnp.full((B, C, abs(shift)), pad_value, dtype=seq.dtype)
    if shift > 0:
        return jnp.concatenate([pad, seq[:, :, :-shift]], axis=2)
    return jnp.concatenate([seq[:, :, -shift:], pad], axis=2)


if __name__ == "__main__":
    key = jax.random.PRNGKey(0)
    k_seq, k_shift = jax.random.split(key)

    # Small one-hot DNA sequence: batch=2, channels=4 (ACGT), length=16.
    B, C, L = 2, 4, 16
    bases = jax.random.randint(k_seq, (B, L), 0, C)
    seq_1hot = jnp.transpose(jax.nn.one_hot(bases, C, dtype=jnp.float32), (0, 2, 1))

    # Force the Pallas path even at demo sizes.
    layer = StochasticShift(shift_max=3, symmetric=False, pad_value=0,
                            min_pallas_elements=0)

    # Forward pass (training mode: random shift applied inside the kernel).
    out = jax.block_until_ready(layer(seq_1hot, k_shift, training=True))
    assert out.shape == seq_1hot.shape and out.dtype == seq_1hot.dtype

    # Eval mode: identity.
    out_eval = layer(seq_1hot, k_shift, training=False)
    assert bool(jnp.all(out_eval == seq_1hot))

    # Check the kernel against the pure-JAX reference for negative, zero and
    # positive shifts (single compiled kernel handles all of them).
    ok = True
    for s in range(-3, 4):
        got = jax.block_until_ready(
            _shift_sequence_pallas(seq_1hot, jnp.asarray(s, jnp.int32), pad_value=0))
        want = _reference_shift(seq_1hot, s, 0)
        ok = ok and bool(jnp.all(got == want))

    print("KERNEL_OK" if ok else "KERNEL_MISMATCH")
</pallas_src>

<mosaic_0001>
module attributes {stable_mosaic.version = 11 : i64} {
  func.func @kernel(%arg0: i32, %arg1: memref<2xi32, #tpu.memory_space<smem>>, %arg2: memref<8x128xf32, #tpu.memory_space<vmem>>, %arg3: memref<8x128xf32, #tpu.memory_space<vmem>>) attributes {dimension_semantics = [#tpu.dimension_semantics<parallel>], iteration_bounds = array<i64: 1>, scalar_prefetch = 1 : i64, scratch_operands = 0 : i64, tpu.core_type = #tpu.core_type<tc>, window_params = [{transform_indices = @transform_0, window_bounds = array<i64: 8, 128>}, {transform_indices = @transform_1, window_bounds = array<i64: 8, 128>}]} {
    %c0 = arith.constant 0 : index
    %c0_0 = arith.constant 0 : index
    %0 = vector.load %arg2[%c0, %c0_0] : memref<8x128xf32, #tpu.memory_space<vmem>>, vector<8x128xf32>
    %c0_1 = arith.constant 0 : index
    %1 = memref.load %arg1[%c0_1] : memref<2xi32, #tpu.memory_space<smem>>
    %c1 = arith.constant 1 : index
    %2 = memref.load %arg1[%c1] : memref<2xi32, #tpu.memory_space<smem>>
    %3 = tpu.dynamic_rotate %0 by %2 dim 1 : vector<8x128xf32>, i32 -> vector<8x128xf32>
    %4 = tpu.iota {dimensions = array<i32: 1>} : vector<8x128xi32>
    %5 = vector.broadcast %1 : i32 to vector<8x128xi32>
    %6 = arith.cmpi sge, %4, %5 : vector<8x128xi32>
    %c16_i32 = arith.constant 16 : i32
    %7 = arith.addi %1, %c16_i32 : i32
    %8 = vector.broadcast %7 : i32 to vector<8x128xi32>
    %9 = arith.cmpi slt, %4, %8 : vector<8x128xi32>
    %10 = arith.andi %6, %9 : vector<8x128xi1>
    %cst = arith.constant 0.000000e+00 : f32
    %11 = vector.broadcast %cst : f32 to vector<8x128xf32>
    %12 = arith.select %10, %3, %11 : vector<8x128xi1>, vector<8x128xf32>
    %c0_2 = arith.constant 0 : index
    %c0_3 = arith.constant 0 : index
    %13 = vector.load %arg3[%c0_2, %c0_3] : memref<8x128xf32, #tpu.memory_space<vmem>>, vector<8x128xf32>
    tpu.vector_store %arg3[%c0_2, %c0_3], %12 {strides = array<i32>} : memref<8x128xf32, #tpu.memory_space<vmem>>, vector<8x128xf32>,
    return
  }
  func.func @transform_0(%arg0: i32, %arg1: memref<2xi32, #tpu.memory_space<smem>>) -> (i32, i32) {
    %c0_i32 = arith.constant 0 : i32
    %c0_i32_0 = arith.constant 0 : i32
    return %arg0, %c0_i32 : i32, i32
  }
  func.func @transform_1(%arg0: i32, %arg1: memref<2xi32, #tpu.memory_space<smem>>) -> (i32, i32) {
    %c0_i32 = arith.constant 0 : i32
    %c0_i32_0 = arith.constant 0 : i32
    return %arg0, %c0_i32 : i32, i32
  }
}

</mosaic_0001>

<llo_original>
// kernel: _shift_sequence_pallas.1
$region0: #{_shift_sequence_pallas.1}
  #allocation0 [shape = 'u32[]', space=smem, size = 0x4, offset = 0x4, fixed_abs, tag = 'smem constant byte address 0x4 - core index']
  #allocation1 [shape = 'u32[144,128]{1,0:T(1,128)}', space=vmem, size = 0x12000, scoped, tag = 'internal scratch']
  #allocation2 [shape = 's32[1]{0}', space=sflag, size = 0x4, scoped, tag = 'scoped memory for _shift_sequence_pallas.1']
  #allocation3 [shape = 'u8[512]{0}', space=smem, size = 0x200, scoped, tag = 'prefetched SMEM operand 0']
  %s0 = inlined_call_operand.vmem [shape: s32[2], index: 0, kind: input, shape index: {}]
  %s1 = inlined_call_operand.vmem [shape: f32[8,128], index: 1, kind: input, shape index: {}]
  %s2 = inlined_call_operand.hbm [shape: f32[8,128], index: 2, kind: output, shape index: {}]
  %s3 = sld [smem:[#allocation0]]
  $region14: #{_shift_sequence_pallas.1} parent=0
    _
  %s5 = ssub.s32 1, %s3
  %s6 = scalar_select 0, %s5, %s3
  %s7 = sshll.u32 %s0, 4
  %s8 = int_to_ptr.vmem [resolvable:$true] %s7
  %10 = dma.vmem_to_smem %s8, 16, [#allocation3], [#allocation2]
  %11 = dma.done [#allocation2], 16
  %12 = sfence
  $region1: #{_shift_sequence_pallas.1} parent=0
    #allocation4 [shape = 'u8[4096]{0}', space=vmem, size = 0x1000, scoped, tag = 'output window, operand 0, single buffered']
    #allocation5 [shape = 's32[1]{0}', space=sflag, size = 0x4, scoped, tag = 'scoped memory for _shift_sequence_pallas.1']
    %13 = vsyncpa [#allocation5], 0
    // Predicated region
    $region2: #{_shift_sequence_pallas.1} parent=1 // pred_check
      _
    $region3: #{_shift_sequence_pallas.1} parent=1 // pred_check_branch
      %15 = sbr.rel (0) target = $region5
    $region4: #{_shift_sequence_pallas.1} parent=1 // pred_region
      _
    $region5: #{_shift_sequence_pallas.1} parent=1 // pred_fallthru
      _
    %v16 = vld [vmem:[%s1] sm:$0xff]
    %s17 = sld [smem:[#allocation3]]
    %s18 = sld [smem:[#allocation3 + $0x1]]
    %s19 = sand.u32 %s18, 127
    %s20 = sand.u32 %s19, 127
    %21 = vrot.lane.b32.xlu0 %v16, %s20
    %v22 = vpop.permute.xlu0 %21
    %v23 = vlaneseq
    %v24 = vand.u32 %v23, 127
    %v25 = vstv %s17
    %vm26 = vcmp.ge.s32.totalorder %v24, %v25
    %s27 = sadd.s32 %s17, 16
    %v28 = vstv %s27
    %vm29 = vcmp.lt.s32.totalorder %v24, %v28
    %vm30 = vmand %vm26, %vm29
    %v31 = vsel %vm30, %v22, 0.0
    %32 = vst [vmem:[#allocation4] sm:$0xff] %v31
    // Predicated region
    $region6: #{_shift_sequence_pallas.1} parent=1 // pred_check
      _
    $region7: #{_shift_sequence_pallas.1} parent=1 // pred_check_branch
      %34 = sbr.rel (0) target = $region9
    $region8: #{_shift_sequence_pallas.1} parent=1 // pred_region
      %s36 = ssub.s32 128, 128
      %37 = vsyncadd [#allocation5], %s36
      %s39 = sshll.u32 [#allocation4], 4
      %s40 = int_to_ptr.vmem [resolvable:$true] %s39
      %42 = dma.vmem_to_hbm [thread:$0]  %s40, 128, %s2, [#allocation5]
    $region9: #{_shift_sequence_pallas.1} parent=1 // pred_fallthru
      _
    // Predicated region
    $region10: #{_shift_sequence_pallas.1} parent=1 // pred_check
      _
    $region11: #{_shift_sequence_pallas.1} parent=1 // pred_check_branch
      %44 = sbr.rel (0) target = $region13
    $region12: #{_shift_sequence_pallas.1} parent=1 // pred_region
      %45 = dma.done [#allocation5], 128
    $region13: #{_shift_sequence_pallas.1} parent=1 // pred_fallthru
      _
    %46 = vsyncpa [#allocation5], 1

</llo_original>
